<compile_context>
chip_gen: v6e
topology: v6e:2x2x1
jax: 0.10.0
libtpu: 0.0.40
codegen_flags: <defaults>
</compile_context>

<pallas_src>
import functools

import jax
import jax.numpy as jnp
from jax import lax
from jax.experimental import pallas as pl
from jax.experimental.pallas import tpu as pltpu


def _round_up(a, b):
    return (a + b - 1) // b * b


def _conv_bn_lrelu_kernel(x_ref, w_ref, sb_ref, o_ref, *, negative_slope):
    # x_ref : (tile_m, K)       bf16  im2col rows for this (image, row-tile)
    # w_ref : (K, Cout_p)       bf16  folded conv weights (taps on K)
    # sb_ref: (2, Cout_p)       f32   row 0 = BN scale, row 1 = BN bias
    # o_ref : (tile_m, Cout_p)        lane-dense output tile
    acc = jnp.dot(x_ref[...], w_ref[...], preferred_element_type=jnp.float32)
    y = acc * sb_ref[0:1, :] + sb_ref[1:2, :]
    y = jnp.where(y >= 0.0, y, y * negative_slope)      # LeakyReLU
    o_ref[...] = y.astype(o_ref.dtype)


def _pick_vmem_limit_bytes():
    # <= ~48 MiB on v7x (64 MiB physical), ~96 MiB on v5e/v6e (128 MiB).
    try:
        cap = int(pltpu.get_tpu_info().vmem_capacity_bytes)
    except Exception:
        cap = 64 * 1024 * 1024
    return max(32 * 1024 * 1024, min((cap * 3) // 4, 100 * 1024 * 1024))


def conv2d_batch_relu(x, weight, gamma, beta, running_mean, running_var, *,
                      stride=1, padding=1, eps=1e-5, negative_slope=0.1,
                      compute_dtype=jnp.bfloat16, tile_m_target=512):
    """x: (N, Cin, H, W); weight: (Cout, Cin, KH, KW). Returns (N, Cout, Hout, Wout)."""
    n, cin, h, w = x.shape
    cout, cin_w, kh, kw = weight.shape
    assert cin_w == cin
    s, p = int(stride), int(padding)

    out_h = (h + 2 * p - kh) // s + 1
    out_w = (w + 2 * p - kw) // s + 1
    m = out_h * out_w
    k_dim = kh * kw * cin
    k_pad = _round_up(k_dim, 16)           # clean bf16 sublane tiling on the RHS
    cout_p = _round_up(cout, 128)          # lane-dense output stores

    tile_m = min(int(tile_m_target), _round_up(m, 16))
    m_pad = _round_up(m, tile_m)
    num_row_tiles = m_pad // tile_m

    # ---- wrapper-side layout plumbing (see TODO at top) --------------------
    x_nhwc = jnp.transpose(x, (0, 2, 3, 1)).astype(compute_dtype)
    xp = jnp.pad(x_nhwc, ((0, 0), (p, p), (p, p), (0, 0)))
    taps = []
    for di in range(kh):
        for dj in range(kw):
            taps.append(lax.slice(
                xp,
                (0, di, dj, 0),
                (n, di + (out_h - 1) * s + 1, dj + (out_w - 1) * s + 1, cin),
                (1, s, s, 1)))                          # (N, out_h, out_w, Cin)
    x_col = jnp.concatenate(taps, axis=-1).reshape(n, m, k_dim)
    x_col = jnp.pad(x_col, ((0, 0), (0, m_pad - m), (0, k_pad - k_dim)))

    # Weights: (Cout, Cin, KH, KW) -> (KH*KW*Cin, Cout), same (di, dj, c)
    # order as the im2col columns; zero-pad K and Cout.
    w_mat = jnp.transpose(weight, (2, 3, 1, 0)).reshape(k_dim, cout)
    w_mat = jnp.pad(w_mat, ((0, k_pad - k_dim), (0, cout_p - cout)))
    w_mat = w_mat.astype(compute_dtype)

    # BatchNorm folded to per-channel scale/bias (f32); padded lanes -> 0.
    inv_std = lax.rsqrt(running_var.astype(jnp.float32) + eps)
    scale = gamma.astype(jnp.float32) * inv_std
    bias = beta.astype(jnp.float32) - running_mean.astype(jnp.float32) * scale
    sb = jnp.pad(jnp.stack([scale, bias], axis=0), ((0, 0), (0, cout_p - cout)))

    kernel = functools.partial(_conv_bn_lrelu_kernel,
                               negative_slope=float(negative_slope))

    in_itemsize = jnp.dtype(compute_dtype).itemsize
    out_itemsize = jnp.dtype(x.dtype).itemsize
    flops = 2 * n * m_pad * k_pad * cout_p
    bytes_accessed = (n * m_pad * k_pad * in_itemsize
                      + k_pad * cout_p * in_itemsize
                      + 2 * cout_p * 4
                      + n * m_pad * cout_p * out_itemsize)

    out_flat = pl.pallas_call(
        kernel,
        out_shape=jax.ShapeDtypeStruct((n, m_pad, cout_p), x.dtype),
        grid_spec=pltpu.PrefetchScalarGridSpec(
            num_scalar_prefetch=0,
            grid=(n, num_row_tiles),
            in_specs=[
                pl.BlockSpec((pl.Squeezed(), tile_m, k_pad),
                             lambda i, t: (i, t, 0)),
                # Constant-index operands (fetched once, tiny here).  At real
                # YOLOv3 sizes add a Cout-tile grid axis and single-buffer
                # them to free VMEM.
                pl.BlockSpec((k_pad, cout_p), lambda i, t: (0, 0)),
                pl.BlockSpec((2, cout_p), lambda i, t: (0, 0)),
            ],
            out_specs=pl.BlockSpec((pl.Squeezed(), tile_m, cout_p),
                                   lambda i, t: (i, t, 0)),
        ),
        compiler_params=pltpu.CompilerParams(
            dimension_semantics=("parallel", "parallel"),
            vmem_limit_bytes=_pick_vmem_limit_bytes(),
        ),
        cost_estimate=pl.CostEstimate(flops=flops, transcendentals=0,
                                      bytes_accessed=bytes_accessed),
    )(x_col, w_mat, sb)

    # Drop M/Cout padding, back to NCHW to match the PyTorch module interface.
    out = out_flat[:, :m, :cout].reshape(n, out_h, out_w, cout)
    return jnp.transpose(out, (0, 3, 1, 2))


def _reference(x, weight, gamma, beta, mean, var, *, stride, padding,
               eps=1e-5, negative_slope=0.1):
    y = lax.conv_general_dilated(
        x, weight, window_strides=(stride, stride),
        padding=((padding, padding), (padding, padding)),
        dimension_numbers=("NCHW", "OIHW", "NCHW"),
        precision=lax.Precision.HIGHEST)
    scale = gamma / jnp.sqrt(var + eps)
    bias = beta - mean * scale
    y = y * scale[None, :, None, None] + bias[None, :, None, None]
    return jnp.where(y >= 0, y, negative_slope * y)


if __name__ == "__main__":
    key = jax.random.PRNGKey(0)
    kx, kw_, kg, kb, km, kv = jax.random.split(key, 6)

    N, CIN, COUT, H, W = 2, 4, 32, 16, 16
    KH = KW = 3
    PAD = 1

    x = jax.random.normal(kx, (N, CIN, H, W), dtype=jnp.float32)
    weight = jax.random.normal(kw_, (COUT, CIN, KH, KW), dtype=jnp.float32) * 0.1
    gamma = jax.random.uniform(kg, (COUT,), minval=0.5, maxval=1.5, dtype=jnp.float32)
    beta = jax.random.normal(kb, (COUT,), dtype=jnp.float32) * 0.1
    running_mean = jax.random.normal(km, (COUT,), dtype=jnp.float32) * 0.1
    running_var = jax.random.uniform(kv, (COUT,), minval=0.5, maxval=1.5,
                                     dtype=jnp.float32)

    # The kernel consumes bf16-quantized activations/weights (f32 accumulate),
    # so compare against the f32 reference evaluated on the same quantized
    # operands.
    xq = x.astype(jnp.bfloat16).astype(jnp.float32)
    wq = weight.astype(jnp.bfloat16).astype(jnp.float32)

    for stride in (1, 2):
        out = conv2d_batch_relu(x, weight, gamma, beta, running_mean,
                                running_var, stride=stride, padding=PAD)
        out = jax.block_until_ready(out)
        ref = _reference(xq, wq, gamma, beta, running_mean, running_var,
                         stride=stride, padding=PAD)
        assert out.shape == ref.shape, (stride, out.shape, ref.shape)
        err = float(jnp.max(jnp.abs(out - ref)))
        assert jnp.allclose(out, ref, rtol=1e-2, atol=1e-2), (stride, err)

    print("KERNEL_OK")
</pallas_src>

<mosaic_0001>
module attributes {stable_mosaic.version = 11 : i64} {
  func.func @_conv_bn_lrelu_kernel(%arg0: i32, %arg1: i32, %arg2: memref<1x256x48xbf16, #tpu.memory_space<vmem>>, %arg3: memref<48x128xbf16, #tpu.memory_space<vmem>>, %arg4: memref<2x128xf32, #tpu.memory_space<vmem>>, %arg5: memref<1x256x128xf32, #tpu.memory_space<vmem>>) attributes {dimension_semantics = [#tpu.dimension_semantics<parallel>, #tpu.dimension_semantics<parallel>], iteration_bounds = array<i64: 2, 1>, scalar_prefetch = 0 : i64, scratch_operands = 0 : i64, tpu.core_type = #tpu.core_type<tc>, window_params = [{transform_indices = @transform_0, window_bounds = array<i64: 1, 256, 48>}, {pipeline_mode = #tpu.pipeline_mode<synchronous>, transform_indices = @transform_1, window_bounds = array<i64: 48, 128>}, {pipeline_mode = #tpu.pipeline_mode<synchronous>, transform_indices = @transform_2, window_bounds = array<i64: 2, 128>}, {transform_indices = @transform_3, window_bounds = array<i64: 1, 256, 128>}]} {
    %c0 = arith.constant 0 : index
    %c0_0 = arith.constant 0 : index
    %c0_1 = arith.constant 0 : index
    %0 = vector.load %arg2[%c0, %c0_0, %c0_1] : memref<1x256x48xbf16, #tpu.memory_space<vmem>>, vector<1x256x48xbf16>
    %1 = vector.shape_cast %0 : vector<1x256x48xbf16> to vector<256x48xbf16>
    %c0_2 = arith.constant 0 : index
    %c0_3 = arith.constant 0 : index
    %2 = vector.load %arg3[%c0_2, %c0_3] : memref<48x128xbf16, #tpu.memory_space<vmem>>, vector<48x128xbf16>
    %cst = arith.constant dense<0.000000e+00> : vector<256x128xf32>
    %3 = tpu.matmul %1, %2, %cst {dimension_numbers = #tpu.dot_dimension_numbers<[1], [0], [0], [1], [0, 0, 1, 1], [], []>} : vector<256x48xbf16>, vector<48x128xbf16>, vector<256x128xf32> -> vector<256x128xf32>
    %c0_4 = arith.constant 0 : index
    %c0_5 = arith.constant 0 : index
    %4 = vector.load %arg4[%c0_4, %c0_5] : memref<2x128xf32, #tpu.memory_space<vmem>>, vector<1x128xf32>
    %5 = vector.broadcast %4 : vector<1x128xf32> to vector<256x128xf32>
    %6 = arith.mulf %3, %5 : vector<256x128xf32>
    %c1 = arith.constant 1 : index
    %c0_6 = arith.constant 0 : index
    %7 = vector.load %arg4[%c1, %c0_6] : memref<2x128xf32, #tpu.memory_space<vmem>>, vector<1x128xf32>
    %8 = vector.broadcast %7 : vector<1x128xf32> to vector<256x128xf32>
    %9 = arith.addf %6, %8 : vector<256x128xf32>
    %cst_7 = arith.constant 0.000000e+00 : f32
    %10 = vector.broadcast %cst_7 : f32 to vector<256x128xf32>
    %11 = arith.cmpf oge, %9, %10 : vector<256x128xf32>
    %cst_8 = arith.constant 1.000000e-01 : f32
    %12 = vector.broadcast %cst_8 : f32 to vector<256x128xf32>
    %13 = arith.mulf %9, %12 : vector<256x128xf32>
    %14 = arith.select %11, %9, %13 : vector<256x128xi1>, vector<256x128xf32>
    %c0_9 = arith.constant 0 : index
    %c0_10 = arith.constant 0 : index
    %c0_11 = arith.constant 0 : index
    %15 = vector.load %arg5[%c0_9, %c0_10, %c0_11] : memref<1x256x128xf32, #tpu.memory_space<vmem>>, vector<1x256x128xf32>
    %16 = vector.shape_cast %15 : vector<1x256x128xf32> to vector<256x128xf32>
    %17 = vector.shape_cast %14 : vector<256x128xf32> to vector<1x256x128xf32>
    tpu.vector_store %arg5[%c0_9, %c0_10, %c0_11], %17 {strides = array<i32>} : memref<1x256x128xf32, #tpu.memory_space<vmem>>, vector<1x256x128xf32>,
    return
  }
  func.func @transform_0(%arg0: i32, %arg1: i32) -> (i32, i32, i32) {
    %c0_i32 = arith.constant 0 : i32
    %c0_i32_0 = arith.constant 0 : i32
    return %arg0, %arg1, %c0_i32 : i32, i32, i32
  }
  func.func @transform_1(%arg0: i32, %arg1: i32) -> (i32, i32) {
    %c0_i32 = arith.constant 0 : i32
    %c0_i32_0 = arith.constant 0 : i32
    %c0_i32_1 = arith.constant 0 : i32
    return %c0_i32, %c0_i32_0 : i32, i32
  }
  func.func @transform_2(%arg0: i32, %arg1: i32) -> (i32, i32) {
    %c0_i32 = arith.constant 0 : i32
    %c0_i32_0 = arith.constant 0 : i32
    %c0_i32_1 = arith.constant 0 : i32
    return %c0_i32, %c0_i32_0 : i32, i32
  }
  func.func @transform_3(%arg0: i32, %arg1: i32) -> (i32, i32, i32) {
    %c0_i32 = arith.constant 0 : i32
    %c0_i32_0 = arith.constant 0 : i32
    return %arg0, %arg1, %c0_i32 : i32, i32, i32
  }
}

</mosaic_0001>

<llo_original>
// kernel: tpu_custom_call.1
$region0: #{tpu_custom_call.1}
  #allocation0 [shape = 'u32[]', space=smem, size = 0x4, offset = 0x4, fixed_abs, tag = 'smem constant byte address 0x4 - core index']
  #allocation1 [shape = 'u32[144,128]{1,0:T(1,128)}', space=vmem, size = 0x12000, scoped, tag = 'internal scratch']
  %s0 = inlined_call_operand.vmem [shape: bf16[2,256,48], index: 0, kind: input, shape index: {}]
  %s1 = inlined_call_operand.vmem [shape: bf16[48,128], index: 1, kind: input, shape index: {}]
  %s2 = inlined_call_operand.vmem [shape: f32[2,128], index: 2, kind: input, shape index: {}]
  %s3 = inlined_call_operand.hbm [shape: f32[2,256,128], index: 3, kind: output, shape index: {}]
  %s4 = sld [smem:[#allocation0]]
  $region45: #{tpu_custom_call.1} parent=0
    _
  %s6 = ssub.s32 1, %s4
  %s7 = scalar_select 0, %s6, %s4
  $region1: #{tpu_custom_call.1} parent=0
    #allocation2 [shape = 'u8[262144]{0}', space=vmem, size = 0x40000, scoped, tag = 'output window, operand 0']
    #allocation3 [shape = 's32[2]{0}', space=sflag, size = 0x8, scoped, tag = 'scoped memory for tpu_custom_call.1']
    %8 = vsyncpa [#allocation3], 0
    %s9 = scalar_lea.sflag [#allocation3], 1
    %10 = vsyncpa %s9, 0
    loop: start=0, step=1, limit=4
    $region2: #{tpu_custom_call.1} parent=1 // loop_pre_header
      _
    $region3: #{tpu_custom_call.1} parent=1 // loop_header
      %s12 = sphi 0, %s16
      %p13 = scmp.ge.s32.totalorder %s12, 4
      %s19 = sphi 0, %s31
      %s20 = sphi 0, %s27
      %s21 = sphi 0, %s19
      %s22 = sphi 0, %s20
      %s23 = sphi 0, %s21
      %s24 = sphi 0, %s22
      %s36 = sphi 0, %s38
      %s39 = sphi 0, %s36
      %s40 = sphi 0, %s39
      %s56 = sphi 0, %s40
      %s60 = sphi 0, %s60
      %s62 = sphi 0, %s60
      %s63 = sphi 0, %s62
      %s77 = sphi 0, %s63
      %s81 = sphi 0, %s81
      %s83 = sphi 0, %s81
      %s84 = sphi 0, %s83
      %s98 = sphi 0, %s84
      %s106 = sphi 0, %s108
      %s109 = sphi 0, %s106
      %s110 = sphi 0, %s109
      %s126 = sphi 0, %s110
    $region4: #{tpu_custom_call.1} parent=1 // loop_header_branch
      %15 = sbr.rel (%p13) target = $region8
    $region5: #{tpu_custom_call.1} parent=1 // loop_body
      %s17 = ssub.s32 %s12, 1
      %s18 = ssub.s32 %s12, 2
      %s25 = sadd.s32 1, %s20
      %p26 = scmp.ge.s32.totalorder %s25, 1
      %s27 = scalar_select %p26, 0, %s25
      %s28 = sadd.s32 1, %s19
      %s29 = scalar_select %p26, %s28, %s19
      %p30 = scmp.ge.s32.totalorder %s29, 2
      %s31 = scalar_select %p30, 0, %s29
      %s32 = ssub.s32 %s19, %s31
      %s33 = ssub.s32 %s20, %s27
      %s34 = sor.u32 %s32, %s33
      %p35 = scmp.eq.s32.totalorder %s34, 0
      %s37 = sadd.s32 %s36, 1
      %s38 = scalar_select %p35, %s36, %s37
      %p41 = pneg %p35
      %p42 = scmp.eq.s32.totalorder %s12, 1
      %p43 = por %p41, %p42
      %p44 = scmp.ne.s32.totalorder %s36, %s39
      %p45 = scmp.eq.s32.totalorder %s12, 0
      %p46 = por %p44, %p45
      %p47 = scmp.ne.s32.totalorder %s36, %s39
      %p48 = scmp.eq.s32.totalorder %s17, 1
      %p49 = por %p47, %p48
      %p50 = scmp.ne.s32.totalorder %s39, %s40
      %p51 = scmp.eq.s32.totalorder %s17, 0
      %p52 = por %p50, %p51
      %p53 = scmp.ne.s32.totalorder %s39, %s40
      %p54 = scmp.eq.s32.totalorder %s18, 1
      %p55 = por %p53, %p54
      %p57 = scmp.ne.s32.totalorder %s40, %s56
      %p58 = scmp.eq.s32.totalorder %s18, 0
      %p59 = por %p57, %p58
      %s61 = sadd.s32 %s60, 1
      %p64 = scmp.eq.s32.totalorder %s12, 1
      %p65 = scmp.ne.s32.totalorder %s60, %s62
      %p66 = scmp.eq.s32.totalorder %s12, 0
      %p67 = por %p65, %p66
      %p68 = scmp.ne.s32.totalorder %s60, %s62
      %p69 = scmp.eq.s32.totalorder %s17, 1
      %p70 = por %p68, %p69
      %p71 = scmp.ne.s32.totalorder %s62, %s63
      %p72 = scmp.eq.s32.totalorder %s17, 0
      %p73 = por %p71, %p72
      %p74 = scmp.ne.s32.totalorder %s62, %s63
      %p75 = scmp.eq.s32.totalorder %s18, 1
      %p76 = por %p74, %p75
      %p78 = scmp.ne.s32.totalorder %s63, %s77
      %p79 = scmp.eq.s32.totalorder %s18, 0
      %p80 = por %p78, %p79
      %s82 = sadd.s32 %s81, 1
      %p85 = scmp.eq.s32.totalorder %s12, 1
      %p86 = scmp.ne.s32.totalorder %s81, %s83
      %p87 = scmp.eq.s32.totalorder %s12, 0
      %p88 = por %p86, %p87
      %p89 = scmp.ne.s32.totalorder %s81, %s83
      %p90 = scmp.eq.s32.totalorder %s17, 1
      %p91 = por %p89, %p90
      %p92 = scmp.ne.s32.totalorder %s83, %s84
      %p93 = scmp.eq.s32.totalorder %s17, 0
      %p94 = por %p92, %p93
      %p95 = scmp.ne.s32.totalorder %s83, %s84
      %p96 = scmp.eq.s32.totalorder %s18, 1
      %p97 = por %p95, %p96
      %p99 = scmp.ne.s32.totalorder %s84, %s98
      %p100 = scmp.eq.s32.totalorder %s18, 0
      %p101 = por %p99, %p100
      %s102 = ssub.s32 %s19, %s31
      %s103 = ssub.s32 %s20, %s27
      %s104 = sor.u32 %s102, %s103
      %p105 = scmp.eq.s32.totalorder %s104, 0
      %s107 = sadd.s32 %s106, 1
      %s108 = scalar_select %p105, %s106, %s107
      %p111 = pneg %p105
      %p112 = scmp.eq.s32.totalorder %s12, 1
      %p113 = por %p111, %p112
      %p114 = scmp.ne.s32.totalorder %s106, %s109
      %p115 = scmp.eq.s32.totalorder %s12, 0
      %p116 = por %p114, %p115
      %p117 = scmp.ne.s32.totalorder %s106, %s109
      %p118 = scmp.eq.s32.totalorder %s17, 1
      %p119 = por %p117, %p118
      %p120 = scmp.ne.s32.totalorder %s109, %s110
      %p121 = scmp.eq.s32.totalorder %s17, 0
      %p122 = por %p120, %p121
      %p123 = scmp.ne.s32.totalorder %s109, %s110
      %p124 = scmp.eq.s32.totalorder %s18, 1
      %p125 = por %p123, %p124
      %p127 = scmp.ne.s32.totalorder %s110, %s126
      %p128 = scmp.eq.s32.totalorder %s18, 0
      %p129 = por %p127, %p128
      %p130 = scmp.le.s32.totalorder 1, %s12
      %p131 = scmp.lt.s32.totalorder %s12, 3
      %p132 = pnand %p130, %p131
      %p133 = pneg %p132
      // Predicated region
      $region9: #{tpu_custom_call.1} parent=5 // pred_check
        _
      $region10: #{tpu_custom_call.1} parent=5 // pred_check_branch
        %135 = sbr.rel (%p132) target = $region12
      $region11: #{tpu_custom_call.1} parent=5 // pred_region
        %s136 = ssub.s32 %s12, 1
        // Predicated region
        $region13: #{tpu_custom_call.1} parent=11 // pred_check
          %p137 = pneg %p73
        $region14: #{tpu_custom_call.1} parent=11 // pred_check_branch
          %139 = sbr.rel (%p137) target = $region16
        $region15: #{tpu_custom_call.1} parent=11 // pred_region
          _
        $region16: #{tpu_custom_call.1} parent=11 // pred_fallthru
          _
        // Predicated region
        $region17: #{tpu_custom_call.1} parent=11 // pred_check
          %p140 = pneg %p94
        $region18: #{tpu_custom_call.1} parent=11 // pred_check_branch
          %142 = sbr.rel (%p140) target = $region20
        $region19: #{tpu_custom_call.1} parent=11 // pred_region
          _
        $region20: #{tpu_custom_call.1} parent=11 // pred_fallthru
          _
      $region12: #{tpu_custom_call.1} parent=5 // pred_fallthru
        _
      %p143 = scmp.lt.s32.totalorder %s12, 2
      // Predicated region
      $region21: #{tpu_custom_call.1} parent=5 // pred_check
        %p144 = pneg %p143
      $region22: #{tpu_custom_call.1} parent=5 // pred_check_branch
        %146 = sbr.rel (%p144) target = $region24
      $region23: #{tpu_custom_call.1} parent=5 // pred_region
        // Predicated region
        $region25: #{tpu_custom_call.1} parent=23 // pred_check
          %p147 = pneg %p46
        $region26: #{tpu_custom_call.1} parent=23 // pred_check_branch
          %149 = sbr.rel (%p147) target = $region28
        $region27: #{tpu_custom_call.1} parent=23 // pred_region
          %s150 = smul.u32 32, %s20
          %p151 = scmp.lt.s32.totalorder %s19, 1
          %s152 = scalar_select %p151, %s19, 1
          %p153 = scmp.lt.s32.totalorder %s150, 31
          %s154 = scalar_select %p153, %s150, 31
          %s155 = smul.addr %s152, 32
          %s156 = sadd.s32 %s154, %s155
          %s157 = smul.addr %s156, 4
          %s158 = scalar_lea.vmem %s0, %s157
          %s159 = smul.u32 32, %s20
        $region28: #{tpu_custom_call.1} parent=23 // pred_fallthru
          _
      $region24: #{tpu_custom_call.1} parent=5 // pred_fallthru
        _
      %p160 = scmp.le.s32.totalorder 1, %s12
      %p161 = scmp.lt.s32.totalorder %s12, 3
      %p162 = pnand %p160, %p161
      %p163 = pneg %p162
      // Predicated region
      $region29: #{tpu_custom_call.1} parent=5 // pred_check
        _
      $region30: #{tpu_custom_call.1} parent=5 // pred_check_branch
        %165 = sbr.rel (%p162) target = $region32
      $region31: #{tpu_custom_call.1} parent=5 // pred_region
        %s166 = ssub.s32 %s12, 1
        %s167 = smul.u32 32, %s22
        %p168 = scmp.lt.s32.totalorder %s21, 1
        %s169 = scalar_select %p168, %s21, 1
        %p170 = scmp.lt.s32.totalorder %s167, 31
        %s171 = scalar_select %p170, %s167, 31
        %s172 = smul.addr %s169, 32
        %s173 = sadd.s32 %s171, %s172
        %s174 = smul.addr %s173, 4
        %s175 = scalar_lea.vmem %s0, %s174
        %p176 = pneg %p52
        %p177 = pneg %p49
        %p178 = pneg %p73
        %p179 = pneg %p70
        %p180 = pneg %p94
        %p181 = pneg %p91
        %p182 = pneg %p122
        %p183 = pneg %p119
        %s184 = sand.u32 %s109, 1
        %s185 = scalar_lea.sflag [#allocation3], %s184
        %s186 = sand.u32 %s109, 1
        %s187 = smul.addr %s186, 256
        %s188 = scalar_lea.vmem [#allocation2], %s187
        %s189 = smul.u32 32, %s22
        %p190 = scmp.lt.s32.totalorder %s21, 1
        %s191 = scalar_select %p190, %s21, 1
        %p192 = scmp.lt.s32.totalorder %s189, 31
        %s193 = scalar_select %p192, %s189, 31
        %s194 = smul.addr %s191, 32
        %s195 = sadd.s32 %s193, %s194
        %s196 = smul.addr %s195, 4
        %s197 = scalar_lea.vmem %s0, %s196
        %s198 = smul.u32 32, %s22
        %s199 = smul.u32 32, %s22
        %v201 = vld [vmem:[%s197] sm:$0xf]
        %v202 = vld [vmem:[%s197 + $0x4] sm:$0xf]
        %v203 = vld [vmem:[%s197 + $0x8] sm:$0xf]
        %v204 = vld [vmem:[%s197 + $0xc] sm:$0xf]
        %v205 = vld [vmem:[%s197 + $0x10] sm:$0xf]
        %v206 = vld [vmem:[%s197 + $0x14] sm:$0xf]
        %v207 = vld [vmem:[%s197 + $0x18] sm:$0xf]
        %v208 = vld [vmem:[%s197 + $0x1c] sm:$0xf]
        %v209 = vld [vmem:[%s197 + $0x20] sm:$0xf]
        %v210 = vld [vmem:[%s197 + $0x24] sm:$0xf]
        %v211 = vld [vmem:[%s197 + $0x28] sm:$0xf]
        %v212 = vld [vmem:[%s197 + $0x2c] sm:$0xf]
        %v213 = vld [vmem:[%s197 + $0x30] sm:$0xf]
        %v214 = vld [vmem:[%s197 + $0x34] sm:$0xf]
        %v215 = vld [vmem:[%s197 + $0x38] sm:$0xf]
        %v216 = vld [vmem:[%s197 + $0x3c] sm:$0xf]
        %v217 = vld [vmem:[%s197 + $0x40] sm:$0xf]
        %v218 = vld [vmem:[%s197 + $0x44] sm:$0xf]
        %v219 = vld [vmem:[%s197 + $0x48] sm:$0xf]
        %v220 = vld [vmem:[%s197 + $0x4c] sm:$0xf]
        %v221 = vld [vmem:[%s197 + $0x50] sm:$0xf]
        %v222 = vld [vmem:[%s197 + $0x54] sm:$0xf]
        %v223 = vld [vmem:[%s197 + $0x58] sm:$0xf]
        %v224 = vld [vmem:[%s197 + $0x5c] sm:$0xf]
        %v225 = vld [vmem:[%s197 + $0x60] sm:$0xf]
        %v226 = vld [vmem:[%s197 + $0x64] sm:$0xf]
        %v227 = vld [vmem:[%s197 + $0x68] sm:$0xf]
        %v228 = vld [vmem:[%s197 + $0x6c] sm:$0xf]
        %v229 = vld [vmem:[%s197 + $0x70] sm:$0xf]
        %v230 = vld [vmem:[%s197 + $0x74] sm:$0xf]
        %v231 = vld [vmem:[%s197 + $0x78] sm:$0xf]
        %v232 = vld [vmem:[%s197 + $0x7c] sm:$0xf]
        %v233 = vld [vmem:[%s1] sm:$0xf]
        %v234 = vld [vmem:[%s1 + $0x4] sm:$0xf]
        %v235 = vld [vmem:[%s1 + $0x8] sm:$0xf]
        %v236 = vld [vmem:[%s1 + $0xc] sm:$0xf]
        %v237 = vld [vmem:[%s1 + $0x10] sm:$0xf]
        %v238 = vld [vmem:[%s1 + $0x14] sm:$0xf]
        %v271 = vunpack.c.l.b16 %v201
        %v272 = vunpack.c.l.b16 %v202
        %v273 = vunpack.c.l.b16 %v203
        %v274 = vunpack.c.l.b16 %v204
        %v275 = vunpack.c.l.b16 %v205
        %v276 = vunpack.c.l.b16 %v206
        %v277 = vunpack.c.l.b16 %v207
        %v278 = vunpack.c.l.b16 %v208
        %v279 = vunpack.c.l.b16 %v209
        %v280 = vunpack.c.l.b16 %v210
        %v281 = vunpack.c.l.b16 %v211
        %v282 = vunpack.c.l.b16 %v212
        %v283 = vunpack.c.l.b16 %v213
        %v284 = vunpack.c.l.b16 %v214
        %v285 = vunpack.c.l.b16 %v215
        %v286 = vunpack.c.l.b16 %v216
        %v287 = vunpack.c.l.b16 %v217
        %v288 = vunpack.c.l.b16 %v218
        %v289 = vunpack.c.l.b16 %v219
        %v290 = vunpack.c.l.b16 %v220
        %v291 = vunpack.c.l.b16 %v221
        %v292 = vunpack.c.l.b16 %v222
        %v293 = vunpack.c.l.b16 %v223
        %v294 = vunpack.c.l.b16 %v224
        %v295 = vunpack.c.l.b16 %v225
        %v296 = vunpack.c.l.b16 %v226
        %v297 = vunpack.c.l.b16 %v227
        %v298 = vunpack.c.l.b16 %v228
        %v299 = vunpack.c.l.b16 %v229
        %v300 = vunpack.c.l.b16 %v230
        %v301 = vunpack.c.l.b16 %v231
        %v302 = vunpack.c.l.b16 %v232
        %v303 = vpack.c.b16 %v272, %v271
        %v304 = vpack.c.b16 %v274, %v273
        %v305 = vpack.c.b16 %v276, %v275
        %v306 = vpack.c.b16 %v278, %v277
        %v307 = vpack.c.b16 %v280, %v279
        %v308 = vpack.c.b16 %v282, %v281
        %v309 = vpack.c.b16 %v284, %v283
        %v310 = vpack.c.b16 %v286, %v285
        %v311 = vpack.c.b16 %v288, %v287
        %v312 = vpack.c.b16 %v290, %v289
        %v313 = vpack.c.b16 %v292, %v291
        %v314 = vpack.c.b16 %v294, %v293
        %v315 = vpack.c.b16 %v296, %v295
        %v316 = vpack.c.b16 %v298, %v297
        %v317 = vpack.c.b16 %v300, %v299
        %v318 = vpack.c.b16 %v302, %v301
        %v325 = vunpack.c.l.b16 %v233
        %v326 = vunpack.c.l.b16 %v234
        %v327 = vunpack.c.l.b16 %v235
        %v328 = vunpack.c.l.b16 %v236
        %v329 = vunpack.c.l.b16 %v237
        %v330 = vunpack.c.l.b16 %v238
        %v331 = vpack.c.b16 %v326, %v325
        %v332 = vpack.c.b16 %v328, %v327
        %v333 = vpack.c.b16 %v330, %v329
        %vm337 = vcmask 392192
        %v339 = vsel %vm337, %v303, 0
        %v342 = vsel %vm337, %v304, 0
        %v345 = vsel %vm337, %v305, 0
        %v348 = vsel %vm337, %v306, 0
        %v351 = vsel %vm337, %v307, 0
        %v354 = vsel %vm337, %v308, 0
        %v357 = vsel %vm337, %v309, 0
        %v360 = vsel %vm337, %v310, 0
        %v363 = vsel %vm337, %v311, 0
        %v366 = vsel %vm337, %v312, 0
        %v369 = vsel %vm337, %v313, 0
        %v372 = vsel %vm337, %v314, 0
        %v375 = vsel %vm337, %v315, 0
        %v378 = vsel %vm337, %v316, 0
        %v381 = vsel %vm337, %v317, 0
        %v384 = vsel %vm337, %v318, 0
        %386 = vmatprep.subr.bf16.mxu0 0
        %387 = vmatpush1.bf16.msra.mxu0 0
        %388 = vmatprep.subr.bf16.mxu0 0
        %389 = vmatpush1.bf16.msra.mxu0 0
        %390 = vmatprep.subr.bf16.mxu0 0
        %391 = vmatpush1.bf16.msra.mxu0 0
        %392 = vmatprep.subr.bf16.mxu0 0
        %393 = vmatpush1.bf16.msra.mxu0 0
        %394 = vmatprep.subr.bf16.mxu0 0
        %395 = vmatpush1.bf16.msra.mxu0 0
        %396 = vmatprep.subr.bf16.mxu0 0
        %397 = vmatpush1.bf16.msra.mxu0 %v333
        %398 = vmatprep.subr.bf16.mxu0 0
        %399 = vmatpush1.bf16.msra.mxu0 %v332
        %400 = vmatprep.subr.bf16.mxu0 0
        %401 = vmatpush1.bf16.msra.mxu0 %v331
        %402 = vmatprep.subr.bf16.mxu0 0
        %403 = vmatpush2.bf16.msra.mxu0 0
        %404 = vmatprep.subr.bf16.mxu0 0
        %405 = vmatpush2.bf16.msra.mxu0 0
        %406 = vmatprep.subr.bf16.mxu0 0
        %407 = vmatpush2.bf16.msra.mxu0 0
        %408 = vmatprep.subr.bf16.mxu0 0
        %409 = vmatpush2.bf16.msra.mxu0 0
        %410 = vmatprep.subr.bf16.mxu0 0
        %411 = vmatpush2.bf16.msra.mxu0 0
        %412 = vmatprep.subr.bf16.mxu0 0
        %413 = vmatpush2.bf16.msra.mxu0 0
        %414 = vmatprep.subr.bf16.mxu0 0
        %415 = vmatpush2.bf16.msra.mxu0 0
        %416 = vmatprep.subr.bf16.mxu0 0
        %417 = vmatpush2.bf16.msra.mxu0 0
        %418 = vmatprep.mubr.bf16.mxu0 0
        %419 = vmatmul.mubr.bf16.gmra.mxu0 %v339
        %v420 = vpop.f32.mrf.mxu0
        %v421 = vadd.f32 0.0, %v420
        %v422 = vpop.f32.mrf.mxu0
        %v423 = vpop.f32.mrf.mxu0
        %v424 = vadd.f32 0.0, %v423
        %v425 = vpop.f32.mrf.mxu0
        %426 = vmatprep.mubr.bf16.mxu0 0
        %427 = vmatmul.mubr.bf16.gmra.mxu0 %v342
        %v428 = vpop.f32.mrf.mxu0
        %v429 = vadd.f32 0.0, %v428
        %v430 = vpop.f32.mrf.mxu0
        %v431 = vpop.f32.mrf.mxu0
        %v432 = vadd.f32 0.0, %v431
        %v433 = vpop.f32.mrf.mxu0
        %434 = vmatprep.mubr.bf16.mxu0 0
        %435 = vmatmul.mubr.bf16.gmra.mxu0 %v345
        %v436 = vpop.f32.mrf.mxu0
        %v437 = vadd.f32 0.0, %v436
        %v438 = vpop.f32.mrf.mxu0
        %v439 = vpop.f32.mrf.mxu0
        %v440 = vadd.f32 0.0, %v439
        %v441 = vpop.f32.mrf.mxu0
        %442 = vmatprep.mubr.bf16.mxu0 0
        %443 = vmatmul.mubr.bf16.gmra.mxu0 %v348
        %v444 = vpop.f32.mrf.mxu0
        %v445 = vadd.f32 0.0, %v444
        %v446 = vpop.f32.mrf.mxu0
        %v447 = vpop.f32.mrf.mxu0
        %v448 = vadd.f32 0.0, %v447
        %v449 = vpop.f32.mrf.mxu0
        %450 = vmatprep.mubr.bf16.mxu0 0
        %451 = vmatmul.mubr.bf16.gmra.mxu0 %v351
        %v452 = vpop.f32.mrf.mxu0
        %v453 = vadd.f32 0.0, %v452
        %v454 = vpop.f32.mrf.mxu0
        %v455 = vpop.f32.mrf.mxu0
        %v456 = vadd.f32 0.0, %v455
        %v457 = vpop.f32.mrf.mxu0
        %458 = vmatprep.mubr.bf16.mxu0 0
        %459 = vmatmul.mubr.bf16.gmra.mxu0 %v354
        %v460 = vpop.f32.mrf.mxu0
        %v461 = vadd.f32 0.0, %v460
        %v462 = vpop.f32.mrf.mxu0
        %v463 = vpop.f32.mrf.mxu0
        %v464 = vadd.f32 0.0, %v463
        %v465 = vpop.f32.mrf.mxu0
        %466 = vmatprep.mubr.bf16.mxu0 0
        %467 = vmatmul.mubr.bf16.gmra.mxu0 %v357
        %v468 = vpop.f32.mrf.mxu0
        %v469 = vadd.f32 0.0, %v468
        %v470 = vpop.f32.mrf.mxu0
        %v471 = vpop.f32.mrf.mxu0
        %v472 = vadd.f32 0.0, %v471
        %v473 = vpop.f32.mrf.mxu0
        %474 = vmatprep.mubr.bf16.mxu0 0
        %475 = vmatmul.mubr.bf16.gmra.mxu0 %v360
        %v476 = vpop.f32.mrf.mxu0
        %v477 = vadd.f32 0.0, %v476
        %v478 = vpop.f32.mrf.mxu0
        %v479 = vpop.f32.mrf.mxu0
        %v480 = vadd.f32 0.0, %v479
        %v481 = vpop.f32.mrf.mxu0
        %482 = vmatprep.mubr.bf16.mxu0 0
        %483 = vmatmul.mubr.bf16.gmra.mxu0 %v363
        %v484 = vpop.f32.mrf.mxu0
        %v485 = vadd.f32 0.0, %v484
        %v486 = vpop.f32.mrf.mxu0
        %v487 = vpop.f32.mrf.mxu0
        %v488 = vadd.f32 0.0, %v487
        %v489 = vpop.f32.mrf.mxu0
        %490 = vmatprep.mubr.bf16.mxu0 0
        %491 = vmatmul.mubr.bf16.gmra.mxu0 %v366
        %v492 = vpop.f32.mrf.mxu0
        %v493 = vadd.f32 0.0, %v492
        %v494 = vpop.f32.mrf.mxu0
        %v495 = vpop.f32.mrf.mxu0
        %v496 = vadd.f32 0.0, %v495
        %v497 = vpop.f32.mrf.mxu0
        %498 = vmatprep.mubr.bf16.mxu0 0
        %499 = vmatmul.mubr.bf16.gmra.mxu0 %v369
        %v500 = vpop.f32.mrf.mxu0
        %v501 = vadd.f32 0.0, %v500
        %v502 = vpop.f32.mrf.mxu0
        %v503 = vpop.f32.mrf.mxu0
        %v504 = vadd.f32 0.0, %v503
        %v505 = vpop.f32.mrf.mxu0
        %506 = vmatprep.mubr.bf16.mxu0 0
        %507 = vmatmul.mubr.bf16.gmra.mxu0 %v372
        %v508 = vpop.f32.mrf.mxu0
        %v509 = vadd.f32 0.0, %v508
        %v510 = vpop.f32.mrf.mxu0
        %v511 = vpop.f32.mrf.mxu0
        %v512 = vadd.f32 0.0, %v511
        %v513 = vpop.f32.mrf.mxu0
        %514 = vmatprep.mubr.bf16.mxu0 0
        %515 = vmatmul.mubr.bf16.gmra.mxu0 %v375
        %v516 = vpop.f32.mrf.mxu0
        %v517 = vadd.f32 0.0, %v516
        %v518 = vpop.f32.mrf.mxu0
        %v519 = vpop.f32.mrf.mxu0
        %v520 = vadd.f32 0.0, %v519
        %v521 = vpop.f32.mrf.mxu0
        %522 = vmatprep.mubr.bf16.mxu0 0
        %523 = vmatmul.mubr.bf16.gmra.mxu0 %v378
        %v524 = vpop.f32.mrf.mxu0
        %v525 = vadd.f32 0.0, %v524
        %v526 = vpop.f32.mrf.mxu0
        %v527 = vpop.f32.mrf.mxu0
        %v528 = vadd.f32 0.0, %v527
        %v529 = vpop.f32.mrf.mxu0
        %530 = vmatprep.mubr.bf16.mxu0 0
        %531 = vmatmul.mubr.bf16.gmra.mxu0 %v381
        %v532 = vpop.f32.mrf.mxu0
        %v533 = vadd.f32 0.0, %v532
        %v534 = vpop.f32.mrf.mxu0
        %v535 = vpop.f32.mrf.mxu0
        %v536 = vadd.f32 0.0, %v535
        %v537 = vpop.f32.mrf.mxu0
        %538 = vmatprep.mubr.bf16.mxu0 0
        %539 = vmatmul.mubr.bf16.gmra.mxu0 %v384
        %v540 = vpop.f32.mrf.mxu0
        %v541 = vadd.f32 0.0, %v540
        %v542 = vpop.f32.mrf.mxu0
        %v543 = vpop.f32.mrf.mxu0
        %v544 = vadd.f32 0.0, %v543
        %v545 = vpop.f32.mrf.mxu0
        %546 = vdwg.mxu0
        %v547 = vld [vmem:[%s2] sm:$0x1]
        %v548 = vlaneseq
        %v549 = vshrl.u32 %v548, 7
        %v550 = vsub.s32 0, %v549
        %v551 = vrot.slane %v547, %v550
        %v552 = vmul.f32 %v421, %v551
        %v553 = vmul.f32 %v424, %v551
        %v554 = vmul.f32 %v429, %v551
        %v555 = vmul.f32 %v432, %v551
        %v556 = vmul.f32 %v437, %v551
        %v557 = vmul.f32 %v440, %v551
        %v558 = vmul.f32 %v445, %v551
        %v559 = vmul.f32 %v448, %v551
        %v560 = vmul.f32 %v453, %v551
        %v561 = vmul.f32 %v456, %v551
        %v562 = vmul.f32 %v461, %v551
        %v563 = vmul.f32 %v464, %v551
        %v564 = vmul.f32 %v469, %v551
        %v565 = vmul.f32 %v472, %v551
        %v566 = vmul.f32 %v477, %v551
        %v567 = vmul.f32 %v480, %v551
        %v568 = vmul.f32 %v485, %v551
        %v569 = vmul.f32 %v488, %v551
        %v570 = vmul.f32 %v493, %v551
        %v571 = vmul.f32 %v496, %v551
        %v572 = vmul.f32 %v501, %v551
        %v573 = vmul.f32 %v504, %v551
        %v574 = vmul.f32 %v509, %v551
        %v575 = vmul.f32 %v512, %v551
        %v576 = vmul.f32 %v517, %v551
        %v577 = vmul.f32 %v520, %v551
        %v578 = vmul.f32 %v525, %v551
        %v579 = vmul.f32 %v528, %v551
        %v580 = vmul.f32 %v533, %v551
        %v581 = vmul.f32 %v536, %v551
        %v582 = vmul.f32 %v541, %v551
        %v583 = vmul.f32 %v544, %v551
        %v584 = vld [vmem:[%s2 + $0x1] sm:$0x1]
        %v585 = vlaneseq
        %v586 = vshrl.u32 %v585, 7
        %v587 = vsub.s32 0, %v586
        %v588 = vrot.slane %v584, %v587
        %v589 = vadd.f32 %v552, %v588
        %v590 = vadd.f32 %v553, %v588
        %v591 = vadd.f32 %v554, %v588
        %v592 = vadd.f32 %v555, %v588
        %v593 = vadd.f32 %v556, %v588
        %v594 = vadd.f32 %v557, %v588
        %v595 = vadd.f32 %v558, %v588
        %v596 = vadd.f32 %v559, %v588
        %v597 = vadd.f32 %v560, %v588
        %v598 = vadd.f32 %v561, %v588
        %v599 = vadd.f32 %v562, %v588
        %v600 = vadd.f32 %v563, %v588
        %v601 = vadd.f32 %v564, %v588
        %v602 = vadd.f32 %v565, %v588
        %v603 = vadd.f32 %v566, %v588
        %v604 = vadd.f32 %v567, %v588
        %v605 = vadd.f32 %v568, %v588
        %v606 = vadd.f32 %v569, %v588
        %v607 = vadd.f32 %v570, %v588
        %v608 = vadd.f32 %v571, %v588
        %v609 = vadd.f32 %v572, %v588
        %v610 = vadd.f32 %v573, %v588
        %v611 = vadd.f32 %v574, %v588
        %v612 = vadd.f32 %v575, %v588
        %v613 = vadd.f32 %v576, %v588
        %v614 = vadd.f32 %v577, %v588
        %v615 = vadd.f32 %v578, %v588
        %v616 = vadd.f32 %v579, %v588
        %v617 = vadd.f32 %v580, %v588
        %v618 = vadd.f32 %v581, %v588
        %v619 = vadd.f32 %v582, %v588
        %v620 = vadd.f32 %v583, %v588
        %vm621 = vcmp.ge.f32.partialorder %v589, 0.0
        %vm622 = vcmp.ge.f32.partialorder %v590, 0.0
        %vm623 = vcmp.ge.f32.partialorder %v591, 0.0
        %vm624 = vcmp.ge.f32.partialorder %v592, 0.0
        %vm625 = vcmp.ge.f32.partialorder %v593, 0.0
        %vm626 = vcmp.ge.f32.partialorder %v594, 0.0
        %vm627 = vcmp.ge.f32.partialorder %v595, 0.0
        %vm628 = vcmp.ge.f32.partialorder %v596, 0.0
        %vm629 = vcmp.ge.f32.partialorder %v597, 0.0
        %vm630 = vcmp.ge.f32.partialorder %v598, 0.0
        %vm631 = vcmp.ge.f32.partialorder %v599, 0.0
        %vm632 = vcmp.ge.f32.partialorder %v600, 0.0
        %vm633 = vcmp.ge.f32.partialorder %v601, 0.0
        %vm634 = vcmp.ge.f32.partialorder %v602, 0.0
        %vm635 = vcmp.ge.f32.partialorder %v603, 0.0
        %vm636 = vcmp.ge.f32.partialorder %v604, 0.0
        %vm637 = vcmp.ge.f32.partialorder %v605, 0.0
        %vm638 = vcmp.ge.f32.partialorder %v606, 0.0
        %vm639 = vcmp.ge.f32.partialorder %v607, 0.0
        %vm640 = vcmp.ge.f32.partialorder %v608, 0.0
        %vm641 = vcmp.ge.f32.partialorder %v609, 0.0
        %vm642 = vcmp.ge.f32.partialorder %v610, 0.0
        %vm643 = vcmp.ge.f32.partialorder %v611, 0.0
        %vm644 = vcmp.ge.f32.partialorder %v612, 0.0
        %vm645 = vcmp.ge.f32.partialorder %v613, 0.0
        %vm646 = vcmp.ge.f32.partialorder %v614, 0.0
        %vm647 = vcmp.ge.f32.partialorder %v615, 0.0
        %vm648 = vcmp.ge.f32.partialorder %v616, 0.0
        %vm649 = vcmp.ge.f32.partialorder %v617, 0.0
        %vm650 = vcmp.ge.f32.partialorder %v618, 0.0
        %vm651 = vcmp.ge.f32.partialorder %v619, 0.0
        %vm652 = vcmp.ge.f32.partialorder %v620, 0.0
        %v653 = vmul.f32 %v589, 0.1
        %v654 = vmul.f32 %v590, 0.1
        %v655 = vmul.f32 %v591, 0.1
        %v656 = vmul.f32 %v592, 0.1
        %v657 = vmul.f32 %v593, 0.1
        %v658 = vmul.f32 %v594, 0.1
        %v659 = vmul.f32 %v595, 0.1
        %v660 = vmul.f32 %v596, 0.1
        %v661 = vmul.f32 %v597, 0.1
        %v662 = vmul.f32 %v598, 0.1
        %v663 = vmul.f32 %v599, 0.1
        %v664 = vmul.f32 %v600, 0.1
        %v665 = vmul.f32 %v601, 0.1
        %v666 = vmul.f32 %v602, 0.1
        %v667 = vmul.f32 %v603, 0.1
        %v668 = vmul.f32 %v604, 0.1
        %v669 = vmul.f32 %v605, 0.1
        %v670 = vmul.f32 %v606, 0.1
        %v671 = vmul.f32 %v607, 0.1
        %v672 = vmul.f32 %v608, 0.1
        %v673 = vmul.f32 %v609, 0.1
        %v674 = vmul.f32 %v610, 0.1
        %v675 = vmul.f32 %v611, 0.1
        %v676 = vmul.f32 %v612, 0.1
        %v677 = vmul.f32 %v613, 0.1
        %v678 = vmul.f32 %v614, 0.1
        %v679 = vmul.f32 %v615, 0.1
        %v680 = vmul.f32 %v616, 0.1
        %v681 = vmul.f32 %v617, 0.1
        %v682 = vmul.f32 %v618, 0.1
        %v683 = vmul.f32 %v619, 0.1
        %v684 = vmul.f32 %v620, 0.1
        %v685 = vsel %vm621, %v589, %v653
        %v686 = vsel %vm622, %v590, %v654
        %v687 = vsel %vm623, %v591, %v655
        %v688 = vsel %vm624, %v592, %v656
        %v689 = vsel %vm625, %v593, %v657
        %v690 = vsel %vm626, %v594, %v658
        %v691 = vsel %vm627, %v595, %v659
        %v692 = vsel %vm628, %v596, %v660
        %v693 = vsel %vm629, %v597, %v661
        %v694 = vsel %vm630, %v598, %v662
        %v695 = vsel %vm631, %v599, %v663
        %v696 = vsel %vm632, %v600, %v664
        %v697 = vsel %vm633, %v601, %v665
        %v698 = vsel %vm634, %v602, %v666
        %v699 = vsel %vm635, %v603, %v667
        %v700 = vsel %vm636, %v604, %v668
        %v701 = vsel %vm637, %v605, %v669
        %v702 = vsel %vm638, %v606, %v670
        %v703 = vsel %vm639, %v607, %v671
        %v704 = vsel %vm640, %v608, %v672
        %v705 = vsel %vm641, %v609, %v673
        %v706 = vsel %vm642, %v610, %v674
        %v707 = vsel %vm643, %v611, %v675
        %v708 = vsel %vm644, %v612, %v676
        %v709 = vsel %vm645, %v613, %v677
        %v710 = vsel %vm646, %v614, %v678
        %v711 = vsel %vm647, %v615, %v679
        %v712 = vsel %vm648, %v616, %v680
        %v713 = vsel %vm649, %v617, %v681
        %v714 = vsel %vm650, %v618, %v682
        %v715 = vsel %vm651, %v619, %v683
        %v716 = vsel %vm652, %v620, %v684
        %717 = vst [vmem:[%s188] sm:$0xff] %v685
        %718 = vst [vmem:[%s188 + $0x8] sm:$0xff] %v686
        %719 = vst [vmem:[%s188 + $0x10] sm:$0xff] %v687
        %720 = vst [vmem:[%s188 + $0x18] sm:$0xff] %v688
        %721 = vst [vmem:[%s188 + $0x20] sm:$0xff] %v689
        %722 = vst [vmem:[%s188 + $0x28] sm:$0xff] %v690
        %723 = vst [vmem:[%s188 + $0x30] sm:$0xff] %v691
        %724 = vst [vmem:[%s188 + $0x38] sm:$0xff] %v692
        %725 = vst [vmem:[%s188 + $0x40] sm:$0xff] %v693
        %726 = vst [vmem:[%s188 + $0x48] sm:$0xff] %v694
        %727 = vst [vmem:[%s188 + $0x50] sm:$0xff] %v695
        %728 = vst [vmem:[%s188 + $0x58] sm:$0xff] %v696
        %729 = vst [vmem:[%s188 + $0x60] sm:$0xff] %v697
        %730 = vst [vmem:[%s188 + $0x68] sm:$0xff] %v698
        %731 = vst [vmem:[%s188 + $0x70] sm:$0xff] %v699
        %732 = vst [vmem:[%s188 + $0x78] sm:$0xff] %v700
        %733 = vst [vmem:[%s188 + $0x80] sm:$0xff] %v701
        %734 = vst [vmem:[%s188 + $0x88] sm:$0xff] %v702
        %735 = vst [vmem:[%s188 + $0x90] sm:$0xff] %v703
        %736 = vst [vmem:[%s188 + $0x98] sm:$0xff] %v704
        %737 = vst [vmem:[%s188 + $0xa0] sm:$0xff] %v705
        %738 = vst [vmem:[%s188 + $0xa8] sm:$0xff] %v706
        %739 = vst [vmem:[%s188 + $0xb0] sm:$0xff] %v707
        %740 = vst [vmem:[%s188 + $0xb8] sm:$0xff] %v708
        %741 = vst [vmem:[%s188 + $0xc0] sm:$0xff] %v709
        %742 = vst [vmem:[%s188 + $0xc8] sm:$0xff] %v710
        %743 = vst [vmem:[%s188 + $0xd0] sm:$0xff] %v711
        %744 = vst [vmem:[%s188 + $0xd8] sm:$0xff] %v712
        %745 = vst [vmem:[%s188 + $0xe0] sm:$0xff] %v713
        %746 = vst [vmem:[%s188 + $0xe8] sm:$0xff] %v714
        %747 = vst [vmem:[%s188 + $0xf0] sm:$0xff] %v715
        %748 = vst [vmem:[%s188 + $0xf8] sm:$0xff] %v716
        %s749 = sand.u32 %s109, 1
        %s750 = scalar_lea.sflag [#allocation3], %s749
        %s751 = sand.u32 %s109, 1
        %s752 = smul.addr %s751, 256
        %s753 = scalar_lea.vmem [#allocation2], %s752
        // Predicated region
        $region33: #{tpu_custom_call.1} parent=31 // pred_check
          %p754 = pneg %p119
        $region34: #{tpu_custom_call.1} parent=31 // pred_check_branch
          %756 = sbr.rel (%p754) target = $region36
        $region35: #{tpu_custom_call.1} parent=31 // pred_region
          %s757 = smul.u32 32, %s22
          %s759 = ssub.s32 4096, 4096
          %760 = vsyncadd %s750, %s759
          %s761 = smul.addr %s21, 32
          %s762 = sadd.s32 %s757, %s761
          %s763 = smul.addr %s762, 128
          %s764 = scalar_lea.hbm %s3, %s763
          %s765 = sshll.u32 %s753, 4
          %s766 = int_to_ptr.vmem [resolvable:$true] %s765
          %771 = dma.vmem_to_hbm [thread:$0]  %s766, 4096, %s764, %s750, 128, 128, 8
        $region36: #{tpu_custom_call.1} parent=31 // pred_fallthru
          _
      $region32: #{tpu_custom_call.1} parent=5 // pred_fallthru
        _
      %p772 = scmp.le.s32.totalorder 2, %s12
      // Predicated region
      $region37: #{tpu_custom_call.1} parent=5 // pred_check
        %p773 = pneg %p772
      $region38: #{tpu_custom_call.1} parent=5 // pred_check_branch
        %775 = sbr.rel (%p773) target = $region40
      $region39: #{tpu_custom_call.1} parent=5 // pred_region
        %s776 = ssub.s32 %s12, 2
        // Predicated region
        $region41: #{tpu_custom_call.1} parent=39 // pred_check
          %p777 = pneg %p125
        $region42: #{tpu_custom_call.1} parent=39 // pred_check_branch
          %779 = sbr.rel (%p777) target = $region44
        $region43: #{tpu_custom_call.1} parent=39 // pred_region
          %s780 = sand.u32 %s110, 1
          %s781 = scalar_lea.sflag [#allocation3], %s780
          %s782 = sand.u32 %s110, 1
          %s783 = smul.addr %s782, 256
          %s784 = scalar_lea.vmem [#allocation2], %s783
          %785 = dma.done %s781, 4096
        $region44: #{tpu_custom_call.1} parent=39 // pred_fallthru
          _
      $region40: #{tpu_custom_call.1} parent=5 // pred_fallthru
        _
    $region6: #{tpu_custom_call.1} parent=1 // loop_footer
      %s16 = sadd.s32 1, %s12
    $region7: #{tpu_custom_call.1} parent=1 // loop_footer_branch
      %11 = sbr.rel target = $region3
    $region8: #{tpu_custom_call.1} parent=1 // loop_exit
      _
    %786 = vsyncpa [#allocation3], 1
    %s787 = scalar_lea.sflag [#allocation3], 1
    %788 = vsyncpa %s787, 1

</llo_original>
